<compile_context>
chip_gen: v5e
topology: v5e:2x2
jax: 0.10.0
libtpu: 0.0.40
codegen_flags: <defaults>
</compile_context>

<pallas_src>
import dataclasses

import jax
import jax.numpy as jnp
from jax.experimental import pallas as pl
from jax.experimental.pallas import tpu as pltpu


def _round_up(n: int, m: int) -> int:
    return ((n + m - 1) // m) * m


# ---------------------------------------------------------------------------
# Kernel: one (tm, tn) output tile, accumulated over K tiles of the hidden
# dim.  Weight arrives pre-transposed/padded as (D_pad, C_pad) so the MXU
# sees the natural (tm, tk) x (tk, tn) contraction (no per-step transpose).
# ---------------------------------------------------------------------------
def _linear_kernel(x_ref, wt_ref, b_ref, o_ref, acc_ref):
    k = pl.program_id(2)

    @pl.when(k == 0)
    def _():
        acc_ref[...] = jnp.zeros_like(acc_ref)

    acc_ref[...] += jnp.dot(x_ref[...], wt_ref[...],
                            preferred_element_type=jnp.float32)

    @pl.when(k == pl.num_programs(2) - 1)
    def _():
        o_ref[...] = (acc_ref[...] + b_ref[...].astype(jnp.float32)
                      ).astype(o_ref.dtype)


@dataclasses.dataclass(frozen=True)
class _Plan:
    batch: int
    input_dim: int
    num_classes: int
    tm: int
    tn: int
    tk: int
    B_pad: int
    D_pad: int
    C_pad: int
    compute_dtype: object
    vmem_limit_bytes: int


def make_plan(batch, input_dim, num_classes, *, compute_dtype=jnp.float32):
    """Static tiling/padding plan derived from shapes and the chip's VMEM."""
    itemsize = jnp.dtype(compute_dtype).itemsize
    sub = 8 if itemsize == 4 else 16          # f32 (8,128) / bf16 (16,128) tile

    # VMEM capacity: 128 MiB on v5e/v6e, 64 MiB per TC on v7x.
    try:
        info = pltpu.get_tpu_info()
        vmem_cap = int(getattr(info, "vmem_capacity_bytes", 64 << 20))
    except Exception:  # no TPU info available -> assume the smallest (v7x)
        vmem_cap = 64 << 20
    vmem_limit = min(vmem_cap * 3 // 4, 100 << 20)   # explicit scoped limit
    tile_budget = (vmem_limit * 4) // 5              # headroom for internals

    # 512-wide tiles hit ~85% of HBM roofline on 128-MiB chips; stay at 256
    # on the 64-MiB-VMEM chip (v7x).
    tile_cap = 512 if vmem_cap >= (100 << 20) else 256

    tn = min(_round_up(num_classes, 128), tile_cap)   # lane-dense classes
    tm = min(_round_up(batch, sub), tile_cap)         # sublane-aligned batch

    # Keep >=2 parallel grid points when possible so both v7x TensorCores get
    # work; costs one extra ~0.35us grid step on single-TC chips.
    if (_round_up(num_classes, tn) // tn == 1
            and _round_up(batch, tm) // tm == 1):
        if tn >= 256:
            tn //= 2
        elif tm >= 2 * sub:
            tm = _round_up(tm // 2, sub)

    C_pad = _round_up(num_classes, tn)
    B_pad = _round_up(batch, tm)

    # K-tile only when whole-D blocks can't be double-buffered in VMEM
    # (e.g. very large D on v7x); otherwise keep D whole per step.
    fixed = 3 * tm * tn * 4 + 2 * tn * 4        # out dbl-buf + f32 acc + bias
    per_k = 2 * (tm + tn) * itemsize            # x + W^T tiles, double-buffered
    if fixed + per_k * input_dim <= tile_budget:
        tk = input_dim
        D_pad = input_dim
    else:
        tk = max(128, ((tile_budget - fixed) // per_k) // 128 * 128)
        D_pad = _round_up(input_dim, tk)

    return _Plan(batch=batch, input_dim=input_dim, num_classes=num_classes,
                 tm=tm, tn=tn, tk=tk, B_pad=B_pad, D_pad=D_pad, C_pad=C_pad,
                 compute_dtype=compute_dtype, vmem_limit_bytes=int(vmem_limit))


def prepare_params(weight, bias, plan):
    """One-time parameter prep (outside the per-step graph).

    weight: (C, D) PyTorch nn.Linear layout.  Returns the weight pre-padded,
    pre-transposed to (D_pad, C_pad) and cast to the compute dtype, plus the
    bias padded/reshaped to (1, C_pad) float32.
    """
    C, D = weight.shape
    assert (C, D) == (plan.num_classes, plan.input_dim)
    w = jnp.pad(weight, ((0, plan.C_pad - C), (0, plan.D_pad - D)))
    w_t = jnp.transpose(w).astype(plan.compute_dtype)          # (D_pad, C_pad)
    b = jnp.pad(bias, (0, plan.C_pad - C)).astype(jnp.float32)
    return w_t, b.reshape(1, plan.C_pad)


def make_forward(plan):
    """Build the jitted forward: y = x @ W.T + b (== nn.Linear forward)."""
    tm, tn, tk = plan.tm, plan.tn, plan.tk
    grid = (plan.C_pad // tn, plan.B_pad // tm, plan.D_pad // tk)
    n_ct, n_bt, n_kt = grid
    itemsz = jnp.dtype(plan.compute_dtype).itemsize

    # Actual HBM traffic: x re-streamed once per class tile; weight read once
    # when D is whole per step (weight block index is constant over the inner
    # batch axis), else once per batch tile.
    cost = pl.CostEstimate(
        flops=2 * plan.B_pad * plan.D_pad * plan.C_pad,
        transcendentals=0,
        bytes_accessed=int(plan.B_pad * plan.D_pad * itemsz * n_ct
                           + plan.D_pad * plan.C_pad * itemsz
                           * (n_bt if n_kt > 1 else 1)
                           + 4 * plan.C_pad
                           + 4 * plan.B_pad * plan.C_pad))

    # Grid order: class tiles outermost (weight tile DMA'd once per class
    # tile), batch tiles in the middle, K reduction innermost ("arbitrary").
    kernel_call = pl.pallas_call(
        _linear_kernel,
        out_shape=jax.ShapeDtypeStruct((plan.B_pad, plan.C_pad), jnp.float32),
        grid=grid,
        in_specs=[
            pl.BlockSpec((tm, tk), lambda j, i, k: (i, k)),   # x tile
            pl.BlockSpec((tk, tn), lambda j, i, k: (k, j)),   # W^T tile
            pl.BlockSpec((1, tn), lambda j, i, k: (0, j)),    # bias tile
        ],
        out_specs=pl.BlockSpec((tm, tn), lambda j, i, k: (i, j)),
        scratch_shapes=[pltpu.VMEM((tm, tn), jnp.float32)],
        compiler_params=pltpu.CompilerParams(
            dimension_semantics=("parallel", "parallel", "arbitrary"),
            vmem_limit_bytes=plan.vmem_limit_bytes),
        cost_estimate=cost,
    )

    @jax.jit
    def forward(x, w_t_prepped, b_prepped):
        B, D = x.shape
        x = x.astype(plan.compute_dtype)
        if plan.B_pad != B or plan.D_pad != D:
            x = jnp.pad(x, ((0, plan.B_pad - B), (0, plan.D_pad - D)))
        out = kernel_call(x, w_t_prepped, b_prepped)
        return out[:plan.batch, :plan.num_classes]

    return forward


if __name__ == "__main__":
    # Small shapes implied by the module: input_dim=32, num_classes=8, batch=2.
    batch, input_dim, num_classes = 2, 32, 8

    key = jax.random.PRNGKey(0)
    kx, kw, kb = jax.random.split(key, 3)

    x = jax.random.normal(kx, (batch, input_dim), dtype=jnp.float32)
    # Deterministic init mimicking nn.Linear's uniform(-1/sqrt(D), 1/sqrt(D)).
    bound = 1.0 / float(input_dim) ** 0.5
    weight = jax.random.uniform(kw, (num_classes, input_dim),
                                minval=-bound, maxval=bound, dtype=jnp.float32)
    bias = jax.random.uniform(kb, (num_classes,),
                              minval=-bound, maxval=bound, dtype=jnp.float32)

    # f32 path (exact nn.Linear semantics).
    plan = make_plan(batch, input_dim, num_classes, compute_dtype=jnp.float32)
    w_t, b2 = prepare_params(weight, bias, plan)      # one-time, outside step
    forward = make_forward(plan)
    y = forward(x, w_t, b2)
    jax.block_until_ready(y)

    y_ref = x @ weight.T + bias
    assert y.shape == (batch, num_classes)
    assert jnp.allclose(y, y_ref, atol=1e-5, rtol=1e-5)

    # Optional bf16 streaming path (halves weight HBM bytes, f32 accumulate).
    plan16 = make_plan(batch, input_dim, num_classes,
                       compute_dtype=jnp.bfloat16)
    w_t16, b16 = prepare_params(weight, bias, plan16)
    y16 = make_forward(plan16)(x, w_t16, b16)
    jax.block_until_ready(y16)
    assert jnp.allclose(y16, y_ref, atol=3e-2, rtol=3e-2)

    print("KERNEL_OK")
</pallas_src>

<mosaic_0001>
module attributes {stable_mosaic.version = 11 : i64} {
  func.func @_linear_kernel(%arg0: i32, %arg1: i32, %arg2: i32, %arg3: memref<8x32xf32, #tpu.memory_space<vmem>>, %arg4: memref<32x128xf32, #tpu.memory_space<vmem>>, %arg5: memref<1x128xf32, #tpu.memory_space<vmem>>, %arg6: memref<8x128xf32, #tpu.memory_space<vmem>>, %arg7: memref<8x128xf32, #tpu.memory_space<vmem>>) attributes {dimension_semantics = [#tpu.dimension_semantics<parallel>, #tpu.dimension_semantics<parallel>, #tpu.dimension_semantics<arbitrary>], iteration_bounds = array<i64: 1, 1, 1>, scalar_prefetch = 0 : i64, scratch_operands = 1 : i64, tpu.core_type = #tpu.core_type<tc>, window_params = [{transform_indices = @transform_0, window_bounds = array<i64: 8, 32>}, {transform_indices = @transform_1, window_bounds = array<i64: 32, 128>}, {transform_indices = @transform_2, window_bounds = array<i64: 1, 128>}, {transform_indices = @transform_3, window_bounds = array<i64: 8, 128>}]} {
    %c0_i32 = arith.constant 0 : i32
    %0 = arith.cmpi eq, %arg2, %c0_i32 : i32
    %1 = arith.extui %0 : i1 to i32
    %c0_i32_0 = arith.constant 0 : i32
    %2 = arith.cmpi ne, %1, %c0_i32_0 : i32
    scf.if %2 {
      %cst_10 = arith.constant 0.000000e+00 : f32
      %12 = vector.broadcast %cst_10 : f32 to vector<8x128xf32>
      %c0_11 = arith.constant 0 : index
      %c0_12 = arith.constant 0 : index
      %13 = vector.load %arg7[%c0_11, %c0_12] : memref<8x128xf32, #tpu.memory_space<vmem>>, vector<8x128xf32>
      tpu.vector_store %arg7[%c0_11, %c0_12], %12 {strides = array<i32>} : memref<8x128xf32, #tpu.memory_space<vmem>>, vector<8x128xf32>,
    } else {
    }
    %c0 = arith.constant 0 : index
    %c0_1 = arith.constant 0 : index
    %3 = vector.load %arg7[%c0, %c0_1] : memref<8x128xf32, #tpu.memory_space<vmem>>, vector<8x128xf32>
    %c0_2 = arith.constant 0 : index
    %c0_3 = arith.constant 0 : index
    %4 = vector.load %arg3[%c0_2, %c0_3] : memref<8x32xf32, #tpu.memory_space<vmem>>, vector<8x32xf32>
    %c0_4 = arith.constant 0 : index
    %c0_5 = arith.constant 0 : index
    %5 = vector.load %arg4[%c0_4, %c0_5] : memref<32x128xf32, #tpu.memory_space<vmem>>, vector<32x128xf32>
    %cst = arith.constant dense<0.000000e+00> : vector<8x128xf32>
    %6 = tpu.matmul %4, %5, %cst {dimension_numbers = #tpu.dot_dimension_numbers<[1], [0], [0], [1], [0, 0, 1, 1], [], []>} : vector<8x32xf32>, vector<32x128xf32>, vector<8x128xf32> -> vector<8x128xf32>
    %7 = arith.addf %3, %6 : vector<8x128xf32>
    %c0_6 = arith.constant 0 : index
    %c0_7 = arith.constant 0 : index
    %8 = vector.load %arg7[%c0_6, %c0_7] : memref<8x128xf32, #tpu.memory_space<vmem>>, vector<8x128xf32>
    tpu.vector_store %arg7[%c0_6, %c0_7], %7 {strides = array<i32>} : memref<8x128xf32, #tpu.memory_space<vmem>>, vector<8x128xf32>,
    %c0_i32_8 = arith.constant 0 : i32
    %9 = arith.cmpi eq, %arg2, %c0_i32_8 : i32
    %10 = arith.extui %9 : i1 to i32
    %c0_i32_9 = arith.constant 0 : i32
    %11 = arith.cmpi ne, %10, %c0_i32_9 : i32
    scf.if %11 {
      %c0_10 = arith.constant 0 : index
      %c0_11 = arith.constant 0 : index
      %12 = vector.load %arg7[%c0_10, %c0_11] : memref<8x128xf32, #tpu.memory_space<vmem>>, vector<8x128xf32>
      %c0_12 = arith.constant 0 : index
      %c0_13 = arith.constant 0 : index
      %13 = vector.load %arg5[%c0_12, %c0_13] : memref<1x128xf32, #tpu.memory_space<vmem>>, vector<1x128xf32>
      %14 = vector.broadcast %13 : vector<1x128xf32> to vector<8x128xf32>
      %15 = arith.addf %12, %14 : vector<8x128xf32>
      %c0_14 = arith.constant 0 : index
      %c0_15 = arith.constant 0 : index
      %16 = vector.load %arg6[%c0_14, %c0_15] : memref<8x128xf32, #tpu.memory_space<vmem>>, vector<8x128xf32>
      tpu.vector_store %arg6[%c0_14, %c0_15], %15 {strides = array<i32>} : memref<8x128xf32, #tpu.memory_space<vmem>>, vector<8x128xf32>,
    } else {
    }
    return
  }
  func.func @transform_0(%arg0: i32, %arg1: i32, %arg2: i32) -> (i32, i32) {
    %c0_i32 = arith.constant 0 : i32
    return %arg1, %arg2 : i32, i32
  }
  func.func @transform_1(%arg0: i32, %arg1: i32, %arg2: i32) -> (i32, i32) {
    %c0_i32 = arith.constant 0 : i32
    return %arg2, %arg0 : i32, i32
  }
  func.func @transform_2(%arg0: i32, %arg1: i32, %arg2: i32) -> (i32, i32) {
    %c0_i32 = arith.constant 0 : i32
    %c0_i32_0 = arith.constant 0 : i32
    return %c0_i32, %arg0 : i32, i32
  }
  func.func @transform_3(%arg0: i32, %arg1: i32, %arg2: i32) -> (i32, i32) {
    %c0_i32 = arith.constant 0 : i32
    return %arg1, %arg0 : i32, i32
  }
}

</mosaic_0001>

<llo_original>
// kernel: forward.1
$region0: #{forward.1}
  #allocation0 [shape = 'u32[]', space=smem, size = 0x4, offset = 0x4, fixed_abs, tag = 'smem constant byte address 0x4 - core index']
  #allocation1 [shape = 'u32[72,128]{1,0:T(1,128)}', space=vmem, size = 0x9000, scoped, tag = 'internal scratch']
  #allocation2 [shape = 'f32[8,128]{1,0:T(8,128)}', space=vmem, size = 0x1000, scoped, tag = 'scratch operand']
  %s0 = inlined_call_operand.vmem [shape: f32[8,32], index: 0, kind: input, shape index: {}]
  %s1 = inlined_call_operand.hbm [shape: f32[32,128], index: 1, kind: input, shape index: {}]
  %s2 = inlined_call_operand.vmem [shape: f32[1,128], index: 2, kind: input, shape index: {}]
  %s3 = inlined_call_operand.vmem [shape: f32[8,128], index: 3, kind: output, shape index: {}]
  %s4 = sld [smem:[#allocation0]]
  $region34: #{forward.1} parent=0
    _
  %s6 = ssub.s32 1, %s4
  %s7 = scalar_select 0, %s6, %s4
  $region1: #{forward.1} parent=0
    #allocation3 [shape = 'u8[16384]{0}', space=vmem, size = 0x4000, scoped, tag = 'input window, operand 1, single buffered']
    #allocation4 [shape = 's32[1]{0}', space=sflag, size = 0x4, scoped, tag = 'scoped memory for forward.1']
    %8 = vsyncpa [#allocation4], 0
    // Predicated region
    $region2: #{forward.1} parent=1 // pred_check
      _
    $region3: #{forward.1} parent=1 // pred_check_branch
      %10 = sbr.rel (0) target = $region5
    $region4: #{forward.1} parent=1 // pred_region
      _
    $region5: #{forward.1} parent=1 // pred_fallthru
      _
    // Predicated region
    $region6: #{forward.1} parent=1 // pred_check
      _
    $region7: #{forward.1} parent=1 // pred_check_branch
      %12 = sbr.rel (0) target = $region9
    $region8: #{forward.1} parent=1 // pred_region
      %14 = vsyncadd [#allocation4], 0
      %s15 = sshll.u32 %s1, 4
      %s16 = int_to_ptr.hbm [resolvable:$true] %s15
      %s17 = sshll.u32 [#allocation3], 4
      %s18 = int_to_ptr.vmem [resolvable:$true] %s17
      %23 = dma.hbm_to_vmem [thread:$0]  %s16, 512, %s18, [#allocation4], 128, 128, 8
    $region9: #{forward.1} parent=1 // pred_fallthru
      _
    // Predicated region
    $region10: #{forward.1} parent=1 // pred_check
      _
    $region11: #{forward.1} parent=1 // pred_check_branch
      %25 = sbr.rel (0) target = $region13
    $region12: #{forward.1} parent=1 // pred_region
      _
    $region13: #{forward.1} parent=1 // pred_fallthru
      _
    // Predicated region
    $region14: #{forward.1} parent=1 // pred_check
      _
    $region15: #{forward.1} parent=1 // pred_check_branch
      %27 = sbr.rel (0) target = $region17
    $region16: #{forward.1} parent=1 // pred_region
      %29 = dma.done [#allocation4], 512
    $region17: #{forward.1} parent=1 // pred_fallthru
      _
    %p30 = scmp.eq.s32.totalorder 0, 0
    // Predicated region
    $region18: #{forward.1} parent=1 // pred_check
      %p31 = pneg %p30
    $region19: #{forward.1} parent=1 // pred_check_branch
      %33 = sbr.rel (%p31) target = $region21
    $region20: #{forward.1} parent=1 // pred_region
      %34 = vst [vmem:[#allocation2] sm:$0xff] 0.0
    $region21: #{forward.1} parent=1 // pred_fallthru
      _
    %v35 = vld [vmem:[#allocation2] sm:$0xff]
    %v36 = vld [vmem:[%s0] sm:$0xff]
    %v37 = vld [vmem:[#allocation3] sm:$0xff]
    %v38 = vld [vmem:[#allocation3 + $0x8] sm:$0xff]
    %v39 = vld [vmem:[#allocation3 + $0x10] sm:$0xff]
    %v40 = vld [vmem:[#allocation3 + $0x18] sm:$0xff]
    %vm41 = vcmask 261120
    %v43 = vsel %vm41, %v36, 0
    %45 = vmatpush.msra.mxu0 0.0
    %46 = vmatpush.msra.mxu0 0.0
    %47 = vmatpush.msra.mxu0 0.0
    %48 = vmatpush.msra.mxu0 0.0
    %49 = vmatpush.msra.mxu0 0.0
    %50 = vmatpush.msra.mxu0 0.0
    %51 = vmatpush.msra.mxu0 0.0
    %52 = vmatpush.msra.mxu0 0.0
    %53 = vmatpush.msra.mxu0 0.0
    %54 = vmatpush.msra.mxu0 0.0
    %55 = vmatpush.msra.mxu0 0.0
    %56 = vmatpush.msra.mxu0 0.0
    %57 = vmatpush.msra.mxu0 %v40
    %58 = vmatpush.msra.mxu0 %v39
    %59 = vmatpush.msra.mxu0 %v38
    %60 = vmatpush.msra.mxu0 %v37
    %61 = vmatmul.f32.gmra.mxu0 %v43
    %v62 = vpop.f32.mrf.mxu0
    %v63 = vadd.f32 0.0, %v62
    %64 = vdwg.mxu0
    %v65 = vadd.f32 %v35, %v63
    %66 = vst [vmem:[#allocation2] sm:$0xff] %v65
    // Predicated region
    $region22: #{forward.1} parent=1 // pred_check
      %p67 = pneg %p30
    $region23: #{forward.1} parent=1 // pred_check_branch
      %69 = sbr.rel (%p67) target = $region25
    $region24: #{forward.1} parent=1 // pred_region
      %v70 = vld [vmem:[#allocation2] sm:$0xff]
      %v71 = vld [vmem:[%s2] sm:$0x1]
      %v73 = vperm.slane %v71, 0
      %v75 = vadd.f32 %v70, %v73
      %76 = vst [vmem:[%s3] sm:$0xff] %v75
    $region25: #{forward.1} parent=1 // pred_fallthru
      _
    // Predicated region
    $region26: #{forward.1} parent=1 // pred_check
      _
    $region27: #{forward.1} parent=1 // pred_check_branch
      %78 = sbr.rel (0) target = $region29
    $region28: #{forward.1} parent=1 // pred_region
      _
    $region29: #{forward.1} parent=1 // pred_fallthru
      _
    // Predicated region
    $region30: #{forward.1} parent=1 // pred_check
      _
    $region31: #{forward.1} parent=1 // pred_check_branch
      %80 = sbr.rel (0) target = $region33
    $region32: #{forward.1} parent=1 // pred_region
      _
    $region33: #{forward.1} parent=1 // pred_fallthru
      _
    %81 = vsyncpa [#allocation4], 1

</llo_original>
